<compile_context>
chip_gen: v7x
topology: tpu7x:2x2x1
jax: 0.10.0
libtpu: 0.0.40
codegen_flags: <defaults>
</compile_context>

<pallas_src>
import math
import functools

import jax
import jax.numpy as jnp
from jax import lax
from jax.experimental import pallas as pl
from jax.experimental.pallas import tpu as pltpu


# ---------------------------------------------------------------------------
# Weight construction
# ---------------------------------------------------------------------------
def gaussian_taps_1d(kernel_size, sigma):
    """1D taps matching the PyTorch formula, normalized to sum 1.

    The module builds kernel = prod_d g_d(x_d) and normalizes by the total sum,
    which equals the outer product of each 1D Gaussian normalized by its own
    sum -> the separable 1D passes are exact (the 1/(std*sqrt(2*pi)) factor
    cancels under normalization).
    """
    mean = (kernel_size - 1) / 2.0
    taps = [math.exp(-(((i - mean) / (2.0 * sigma)) ** 2)) for i in range(kernel_size)]
    s = sum(taps)
    return tuple(float(t) / s for t in taps)


def make_gaussian_weight(channels, kernel_size, sigma, dim=2, dtype=jnp.float32):
    """Reproduces GaussianSmoothing.__init__ weight exactly (for the reference check)."""
    if isinstance(kernel_size, (int, float)):
        kernel_size = [kernel_size] * dim
    if isinstance(sigma, (int, float)):
        sigma = [float(sigma)] * dim

    meshgrids = jnp.meshgrid(
        *[jnp.arange(size, dtype=jnp.float32) for size in kernel_size],
        indexing="ij",
    )
    kernel = jnp.array(1.0, dtype=jnp.float32)
    for size, std, mgrid in zip(kernel_size, sigma, meshgrids):
        mean = (size - 1) / 2
        kernel = kernel * (
            1.0 / (std * math.sqrt(2.0 * math.pi))
            * jnp.exp(-(((mgrid - mean) / (2.0 * std)) ** 2))
        )
    kernel = kernel / jnp.sum(kernel)
    kernel = jnp.broadcast_to(kernel[None, None], (channels, 1) + kernel.shape)
    return kernel.astype(dtype)


# ---------------------------------------------------------------------------
# Pallas kernel
# ---------------------------------------------------------------------------
def _gauss_sep_kernel(x_ref, o_ref, *, taps_h, taps_w):
    """One grid step: TC fused channel planes, separable Gaussian, f32 accumulate."""
    _, h_out, w_out = o_ref.shape
    x = x_ref[...].astype(jnp.float32)            # (TC, H, W)

    # --- height (column) pass FIRST: sublane-offset slices; shrinks the f32
    # temporary (and the width-pass work below) from H to H_out rows.
    t = taps_h[0] * x[:, 0:h_out, :]
    for i in range(1, len(taps_h)):
        t = t + taps_h[i] * x[:, i:i + h_out, :]

    # --- width (row) pass: static lane-offset slices, taps are compile-time
    # Python floats (identical for every channel -> no tap table, no lookups).
    acc = taps_w[0] * t[:, :, 0:w_out]
    for j in range(1, len(taps_w)):
        acc = acc + taps_w[j] * t[:, :, j:j + w_out]

    o_ref[...] = acc.astype(o_ref.dtype)
    # TODO(synk): for bf16 inputs on v6e/v7x keep the width pass in packed bf16
    # (f32 only for the height accumulation); on v7x, if VALU saturates, move
    # the passes to the idle MXU as banded tap-matrix matmuls.


# ---------------------------------------------------------------------------
# VMEM budgeting / block selection
# ---------------------------------------------------------------------------
def _vmem_budget_bytes():
    """(block_budget_bytes, vmem_limit_bytes) per TPU generation.

    v7x-class parts (64 MiB physical VMEM per core) get a tighter budget; v5e /
    v6e (128 MiB physical) get larger blocks + a raised scoped-VMEM limit.
    Conservative (v7x-like) fallback if the hardware query is unavailable.
    """
    try:
        cap = int(pltpu.get_tpu_info().vmem_capacity_bytes)
    except Exception:
        cap = 64 << 20
    if cap <= (64 << 20):
        return 14 << 20, 32 << 20
    return 24 << 20, 64 << 20


def _block_resident_bytes(tc, h, w, h_out, w_out, dtype):
    """Per-grid-step VMEM: double-buffered I/O blocks at the I/O dtype plus the
    single-counted f32 temporaries (upcast input, height-pass result, accumulator)."""
    item = jnp.dtype(dtype).itemsize
    io = 2 * tc * (h * w + h_out * w_out) * item
    tmp = 4 * tc * (h * w + h_out * w + h_out * w_out)
    return io + tmp


def _pick_block_channels(nc, h, w, h_out, w_out, dtype, budget_bytes, limit_bytes):
    """Largest channel-fusion factor (divisor of nc) under the VMEM budget that
    still leaves >= 8 grid steps when nc allows, so load(i+1)/compute(i)/store(i-1)
    actually overlap (and both v7x TensorCores get several steps each)."""
    resident = lambda t: _block_resident_bytes(t, h, w, h_out, w_out, dtype)
    divisors = [d for d in range(1, nc + 1) if nc % d == 0]
    fitting = [d for d in divisors if resident(d) <= budget_bytes]
    if not fitting:
        if resident(1) <= int(0.8 * limit_bytes):
            return 1
        # TODO(synk): strip-tile H with a (KH-1) row halo as a second grid axis so
        # huge single planes fit v7x's 64 MiB VMEM instead of erroring out here.
        raise NotImplementedError(
            "GaussianSmoothing Pallas kernel: a single-channel plane needs "
            f"{resident(1)} bytes of VMEM (> limit {limit_bytes}); "
            "H strip-tiling is not implemented."
        )
    target_steps = min(8, nc)
    deep = [d for d in fitting if nc // d >= target_steps]
    return max(deep) if deep else max(fitting)


# ---------------------------------------------------------------------------
# Wrapper
# ---------------------------------------------------------------------------
def gaussian_smoothing_2d(x, kernel_size, sigma):
    """x: (N, C, H, W) -> (N, C, H-KH+1, W-KW+1), matching GaussianSmoothing.forward."""
    n, c, h, w = x.shape
    if isinstance(kernel_size, (int, float)):
        kh = kw = int(kernel_size)
    else:
        kh, kw = (int(k) for k in kernel_size)
    if isinstance(sigma, (int, float)):
        sh = sw = float(sigma)
    else:
        sh, sw = (float(s) for s in sigma)

    h_out = h - kh + 1
    w_out = w - kw + 1
    assert h_out > 0 and w_out > 0

    taps_h = gaussian_taps_1d(kh, sh)
    taps_w = gaussian_taps_1d(kw, sw)

    nc = n * c
    budget, vmem_limit = _vmem_budget_bytes()
    tc = _pick_block_channels(nc, h, w, h_out, w_out, x.dtype, budget, vmem_limit)
    grid = (nc // tc,)

    # Fuse batch & channels (free reshape). No padding / no post-slice: input and
    # output each get exactly one HBM pass; only the tail vreg of each output row
    # is a masked store when W_out is not a multiple of 128.
    # TODO(synk): for tiny W (< 128) a channels-last / lane-packed layout would
    # raise lane occupancy; with W on the lane axis this layout targets large planes.
    x2 = x.reshape(nc, h, w)

    kernel = functools.partial(_gauss_sep_kernel, taps_h=taps_h, taps_w=taps_w)

    out = pl.pallas_call(
        kernel,
        out_shape=jax.ShapeDtypeStruct((nc, h_out, w_out), x.dtype),
        grid_spec=pltpu.PrefetchScalarGridSpec(
            num_scalar_prefetch=0,
            grid=grid,
            in_specs=[pl.BlockSpec((tc, h, w), lambda b: (b, 0, 0))],
            out_specs=pl.BlockSpec((tc, h_out, w_out), lambda b: (b, 0, 0)),
        ),
        compiler_params=pltpu.CompilerParams(
            dimension_semantics=("parallel",),
            vmem_limit_bytes=vmem_limit,
        ),
    )(x2)

    return out.reshape(n, c, h_out, w_out)


# ---------------------------------------------------------------------------
# Demo / self-check
# ---------------------------------------------------------------------------
if __name__ == "__main__":
    N, C, H, W = 2, 4, 16, 16
    KSIZE, SIGMA = 3, 0.5

    key = jax.random.PRNGKey(0)
    x = jax.random.normal(key, (N, C, H, W), dtype=jnp.float32)

    out = gaussian_smoothing_2d(x, KSIZE, SIGMA)
    out = jax.block_until_ready(out)

    # Reference: exact PyTorch-style 2D weight + depthwise conv via lax.
    weight = make_gaussian_weight(C, KSIZE, SIGMA, dim=2, dtype=x.dtype)
    ref = lax.conv_general_dilated(
        x, weight,
        window_strides=(1, 1), padding="VALID",
        dimension_numbers=("NCHW", "OIHW", "NCHW"),
        feature_group_count=C,
    )
    assert out.shape == (N, C, H - KSIZE + 1, W - KSIZE + 1)
    assert jnp.allclose(out, ref, atol=1e-5, rtol=1e-5)

    print("KERNEL_OK")
</pallas_src>

<mosaic_0001>
module attributes {stable_mosaic.version = 11 : i64} {
  func.func @_gauss_sep_kernel(%arg0: i32, %arg1: memref<1x16x16xf32, #tpu.memory_space<vmem>>, %arg2: memref<1x14x14xf32, #tpu.memory_space<vmem>>) attributes {dimension_semantics = [#tpu.dimension_semantics<parallel>], iteration_bounds = array<i64: 8>, scalar_prefetch = 0 : i64, scratch_operands = 0 : i64, tpu.core_type = #tpu.core_type<tc>, window_params = [{transform_indices = @transform_0, window_bounds = array<i64: 1, 16, 16>}, {transform_indices = @transform_1, window_bounds = array<i64: 1, 14, 14>}]} {
    %c0 = arith.constant 0 : index
    %c0_0 = arith.constant 0 : index
    %c0_1 = arith.constant 0 : index
    %0 = vector.load %arg1[%c0, %c0_0, %c0_1] : memref<1x16x16xf32, #tpu.memory_space<vmem>>, vector<1x16x16xf32>
    %1 = vector.extract_strided_slice %0 {offsets = [0, 0, 0], sizes = [1, 14, 16], strides = [1, 1, 1]} : vector<1x16x16xf32> to vector<1x14x16xf32>
    %cst = arith.constant 0.211941555 : f32
    %2 = vector.broadcast %cst : f32 to vector<1x14x16xf32>
    %3 = arith.mulf %2, %1 : vector<1x14x16xf32>
    %4 = vector.extract_strided_slice %0 {offsets = [0, 1, 0], sizes = [1, 14, 16], strides = [1, 1, 1]} : vector<1x16x16xf32> to vector<1x14x16xf32>
    %cst_2 = arith.constant 0.57611686 : f32
    %5 = vector.broadcast %cst_2 : f32 to vector<1x14x16xf32>
    %6 = arith.mulf %5, %4 : vector<1x14x16xf32>
    %7 = arith.addf %3, %6 : vector<1x14x16xf32>
    %8 = vector.extract_strided_slice %0 {offsets = [0, 2, 0], sizes = [1, 14, 16], strides = [1, 1, 1]} : vector<1x16x16xf32> to vector<1x14x16xf32>
    %cst_3 = arith.constant 0.211941555 : f32
    %9 = vector.broadcast %cst_3 : f32 to vector<1x14x16xf32>
    %10 = arith.mulf %9, %8 : vector<1x14x16xf32>
    %11 = arith.addf %7, %10 : vector<1x14x16xf32>
    %12 = vector.extract_strided_slice %11 {offsets = [0, 0, 0], sizes = [1, 14, 14], strides = [1, 1, 1]} : vector<1x14x16xf32> to vector<1x14x14xf32>
    %cst_4 = arith.constant 0.211941555 : f32
    %13 = vector.broadcast %cst_4 : f32 to vector<1x14x14xf32>
    %14 = arith.mulf %13, %12 : vector<1x14x14xf32>
    %15 = vector.extract_strided_slice %11 {offsets = [0, 0, 1], sizes = [1, 14, 14], strides = [1, 1, 1]} : vector<1x14x16xf32> to vector<1x14x14xf32>
    %cst_5 = arith.constant 0.57611686 : f32
    %16 = vector.broadcast %cst_5 : f32 to vector<1x14x14xf32>
    %17 = arith.mulf %16, %15 : vector<1x14x14xf32>
    %18 = arith.addf %14, %17 : vector<1x14x14xf32>
    %19 = vector.extract_strided_slice %11 {offsets = [0, 0, 2], sizes = [1, 14, 14], strides = [1, 1, 1]} : vector<1x14x16xf32> to vector<1x14x14xf32>
    %cst_6 = arith.constant 0.211941555 : f32
    %20 = vector.broadcast %cst_6 : f32 to vector<1x14x14xf32>
    %21 = arith.mulf %20, %19 : vector<1x14x14xf32>
    %22 = arith.addf %18, %21 : vector<1x14x14xf32>
    %c0_7 = arith.constant 0 : index
    %c0_8 = arith.constant 0 : index
    %c0_9 = arith.constant 0 : index
    %23 = vector.load %arg2[%c0_7, %c0_8, %c0_9] : memref<1x14x14xf32, #tpu.memory_space<vmem>>, vector<1x14x14xf32>
    tpu.vector_store %arg2[%c0_7, %c0_8, %c0_9], %22 {strides = array<i32>} : memref<1x14x14xf32, #tpu.memory_space<vmem>>, vector<1x14x14xf32>,
    return
  }
  func.func @transform_0(%arg0: i32) -> (i32, i32, i32) {
    %c0_i32 = arith.constant 0 : i32
    %c0_i32_0 = arith.constant 0 : i32
    %c0_i32_1 = arith.constant 0 : i32
    return %arg0, %c0_i32, %c0_i32_0 : i32, i32, i32
  }
  func.func @transform_1(%arg0: i32) -> (i32, i32, i32) {
    %c0_i32 = arith.constant 0 : i32
    %c0_i32_0 = arith.constant 0 : i32
    %c0_i32_1 = arith.constant 0 : i32
    return %arg0, %c0_i32, %c0_i32_0 : i32, i32, i32
  }
}

</mosaic_0001>

<llo_original>
// kernel: tpu_custom_call.1
$region0: #{tpu_custom_call.1}
  #allocation0 [shape = 'u32[]', space=smem, size = 0x4, offset = 0x4, fixed_abs, tag = 'smem constant byte address 0x4 - core index']
  #allocation1 [shape = 'u32[144,128]{1,0:T(1,128)}', space=vmem, size = 0x12000, scoped, tag = 'internal scratch']
  %s0 = inlined_call_operand.hbm [shape: f32[8,16,16], index: 0, kind: input, shape index: {}]
  %s1 = inlined_call_operand.vmem [shape: f32[8,14,14], index: 1, kind: output, shape index: {}]
  %s2 = sld [smem:[#allocation0]]
  $region41: #{tpu_custom_call.1} parent=0
    _
  %s4 = ssub.s32 1, %s2
  %s5 = scalar_select 0, %s4, %s2
  $region1: #{tpu_custom_call.1} parent=0
    #allocation2 [shape = 'u8[16384]{0}', space=vmem, size = 0x4000, scoped, tag = 'input window, operand 0']
    #allocation3 [shape = 's32[2]{0}', space=sflag, size = 0x8, scoped, tag = 'scoped memory for tpu_custom_call.1']
    %6 = vsyncpa [#allocation3], 0
    %s7 = scalar_lea.sflag [#allocation3], 1
    %8 = vsyncpa %s7, 0
    loop: start=0, step=1, limit=10
    $region2: #{tpu_custom_call.1} parent=1 // loop_pre_header
      _
    $region3: #{tpu_custom_call.1} parent=1 // loop_header
      %s10 = sphi 0, %s14
      %p11 = scmp.ge.s32.totalorder %s10, 10
      %s20 = sphi 0, %s22
      %s23 = sphi 0, %s20
      %s24 = sphi 0, %s23
      %s40 = sphi 0, %s24
      %s46 = sphi 0, %s48
      %s49 = sphi 0, %s46
      %s50 = sphi 0, %s49
      %s66 = sphi 0, %s50
    $region4: #{tpu_custom_call.1} parent=1 // loop_header_branch
      %13 = sbr.rel (%p11) target = $region8
    $region5: #{tpu_custom_call.1} parent=1 // loop_body
      %s15 = ssub.s32 %s10, 1
      %s16 = ssub.s32 %s10, 2
      %s17 = sadd.s32 %s10, 1
      %s18 = ssub.s32 %s10, %s17
      %p19 = scmp.eq.s32.totalorder %s18, 0
      %s21 = sadd.s32 %s20, 1
      %s22 = scalar_select %p19, %s20, %s21
      %p25 = pneg %p19
      %p26 = scmp.eq.s32.totalorder %s10, 7
      %p27 = por %p25, %p26
      %p28 = scmp.ne.s32.totalorder %s20, %s23
      %p29 = scmp.eq.s32.totalorder %s10, 0
      %p30 = por %p28, %p29
      %p31 = scmp.ne.s32.totalorder %s20, %s23
      %p32 = scmp.eq.s32.totalorder %s15, 7
      %p33 = por %p31, %p32
      %p34 = scmp.ne.s32.totalorder %s23, %s24
      %p35 = scmp.eq.s32.totalorder %s15, 0
      %p36 = por %p34, %p35
      %p37 = scmp.ne.s32.totalorder %s23, %s24
      %p38 = scmp.eq.s32.totalorder %s16, 7
      %p39 = por %p37, %p38
      %p41 = scmp.ne.s32.totalorder %s24, %s40
      %p42 = scmp.eq.s32.totalorder %s16, 0
      %p43 = por %p41, %p42
      %s44 = ssub.s32 %s10, %s17
      %p45 = scmp.eq.s32.totalorder %s44, 0
      %s47 = sadd.s32 %s46, 1
      %s48 = scalar_select %p45, %s46, %s47
      %p51 = pneg %p45
      %p52 = scmp.eq.s32.totalorder %s10, 7
      %p53 = por %p51, %p52
      %p54 = scmp.ne.s32.totalorder %s46, %s49
      %p55 = scmp.eq.s32.totalorder %s10, 0
      %p56 = por %p54, %p55
      %p57 = scmp.ne.s32.totalorder %s46, %s49
      %p58 = scmp.eq.s32.totalorder %s15, 7
      %p59 = por %p57, %p58
      %p60 = scmp.ne.s32.totalorder %s49, %s50
      %p61 = scmp.eq.s32.totalorder %s15, 0
      %p62 = por %p60, %p61
      %p63 = scmp.ne.s32.totalorder %s49, %s50
      %p64 = scmp.eq.s32.totalorder %s16, 7
      %p65 = por %p63, %p64
      %p67 = scmp.ne.s32.totalorder %s50, %s66
      %p68 = scmp.eq.s32.totalorder %s16, 0
      %p69 = por %p67, %p68
      %p70 = scmp.le.s32.totalorder 1, %s10
      %p71 = scmp.lt.s32.totalorder %s10, 9
      %p72 = pnand %p70, %p71
      %p73 = pneg %p72
      // Predicated region
      $region9: #{tpu_custom_call.1} parent=5 // pred_check
        _
      $region10: #{tpu_custom_call.1} parent=5 // pred_check_branch
        %75 = sbr.rel (%p72) target = $region12
      $region11: #{tpu_custom_call.1} parent=5 // pred_region
        %s76 = ssub.s32 %s10, 1
      $region12: #{tpu_custom_call.1} parent=5 // pred_fallthru
        _
      %p77 = scmp.lt.s32.totalorder %s10, 8
      // Predicated region
      $region13: #{tpu_custom_call.1} parent=5 // pred_check
        %p78 = pneg %p77
      $region14: #{tpu_custom_call.1} parent=5 // pred_check_branch
        %80 = sbr.rel (%p78) target = $region16
      $region15: #{tpu_custom_call.1} parent=5 // pred_region
        // Predicated region
        $region17: #{tpu_custom_call.1} parent=15 // pred_check
          %p81 = pneg %p30
        $region18: #{tpu_custom_call.1} parent=15 // pred_check_branch
          %83 = sbr.rel (%p81) target = $region20
        $region19: #{tpu_custom_call.1} parent=15 // pred_region
          %s84 = sand.u32 %s20, 1
          %s85 = scalar_lea.sflag [#allocation3], %s84
          %s86 = sand.u32 %s20, 1
          %s87 = smul.addr %s86, 16
          %s88 = scalar_lea.vmem [#allocation2], %s87
          %s90 = ssub.s32 256, 256
          %91 = vsyncadd %s85, %s90
          %s92 = smul.addr %s10, 2
          %s93 = smul.addr %s92, 128
          %s94 = scalar_lea.hbm %s0, %s93
          %s95 = sshll.u32 %s88, 4
          %s96 = int_to_ptr.vmem [resolvable:$true] %s95
          %101 = dma.hbm_to_vmem [thread:$0]  %s94, 256, %s96, %s85, 128, 128, 8
        $region20: #{tpu_custom_call.1} parent=15 // pred_fallthru
          _
      $region16: #{tpu_custom_call.1} parent=5 // pred_fallthru
        _
      %p102 = scmp.le.s32.totalorder 1, %s10
      %p103 = scmp.lt.s32.totalorder %s10, 9
      %p104 = pnand %p102, %p103
      %p105 = pneg %p104
      // Predicated region
      $region21: #{tpu_custom_call.1} parent=5 // pred_check
        _
      $region22: #{tpu_custom_call.1} parent=5 // pred_check_branch
        %107 = sbr.rel (%p104) target = $region24
      $region23: #{tpu_custom_call.1} parent=5 // pred_region
        %s108 = ssub.s32 %s10, 1
        %s109 = sand.u32 %s23, 1
        %s110 = scalar_lea.sflag [#allocation3], %s109
        %s111 = sand.u32 %s23, 1
        %s112 = smul.addr %s111, 16
        %s113 = scalar_lea.vmem [#allocation2], %s112
        // Predicated region
        $region25: #{tpu_custom_call.1} parent=23 // pred_check
          %p114 = pneg %p36
        $region26: #{tpu_custom_call.1} parent=23 // pred_check_branch
          %116 = sbr.rel (%p114) target = $region28
        $region27: #{tpu_custom_call.1} parent=23 // pred_region
          %117 = dma.done %s110, 256
        $region28: #{tpu_custom_call.1} parent=23 // pred_fallthru
          _
        %s118 = sand.u32 %s23, 1
        %s119 = scalar_lea.sflag [#allocation3], %s118
        %s120 = sand.u32 %s23, 1
        %s121 = smul.addr %s120, 16
        %s122 = scalar_lea.vmem [#allocation2], %s121
        %p123 = pneg %p36
        %p124 = pneg %p33
        %p125 = pneg %p62
        %p126 = pneg %p59
        %p127 = scmp.lt.s32.totalorder %s15, 7
        %s128 = scalar_select %p127, %s15, 7
        %s129 = smul.addr %s128, 2
        %s130 = smul.addr %s129, 8
        %s131 = scalar_lea.vmem %s1, %s130
        %p132 = scmp.lt.s32.totalorder %s15, 7
        %s133 = scalar_select %p132, %s15, 7
        %s134 = smul.addr %s133, 2
        %s135 = smul.addr %s134, 8
        %s136 = scalar_lea.vmem %s1, %s135
        %v137 = vld [vmem:[%s113] sm:$0xff]
        %v138 = vld [vmem:[%s113 + $0x8] sm:$0xff]
        %v139 = vmul.f32 %v137, 0.21194156
        %v140 = vmul.f32 %v138, 0.21194156
        %v141 = vmul.f32 %v137, 0.57611686
        %v142 = vmul.f32 %v138, 0.57611686
        %vm145 = vcmask 1046528
        %v146 = vrot.slane %v141, 1
        %v147 = vrot.slane %v142, 1
        %v148 = vsel %vm145, %v146, %v147
        %v151 = vadd.f32 %v139, %v148
        %v152 = vadd.f32 %v140, %v147
        %vm155 = vcmask 1045504
        %v156 = vrot.slane %v139, 2
        %v157 = vrot.slane %v140, 2
        %v158 = vsel %vm155, %v156, %v157
        %v161 = vadd.f32 %v151, %v158
        %v162 = vadd.f32 %v152, %v157
        %v163 = vmul.f32 %v161, 0.21194156
        %v164 = vmul.f32 %v162, 0.21194156
        %v165 = vmul.f32 %v161, 0.57611686
        %v166 = vmul.f32 %v162, 0.57611686
        %169 = vrot.lane.b32.xlu0 %v165, 127
        %v170 = vpop.permute.xlu0 %169
        %171 = vrot.lane.b32.xlu0 %v166, 127
        %v172 = vpop.permute.xlu0 %171
        %v175 = vadd.f32 %v163, %v170
        %v176 = vadd.f32 %v164, %v172
        %179 = vrot.lane.b32.xlu0 %v163, 126
        %v180 = vpop.permute.xlu0 %179
        %181 = vrot.lane.b32.xlu0 %v164, 126
        %v182 = vpop.permute.xlu0 %181
        %v185 = vadd.f32 %v175, %v180
        %v186 = vadd.f32 %v176, %v182
        %vm187 = vcmask 113664
        %188 = vst.msk [vmem:[%s136] sm:$0xff] %vm187, %v185
        %vm189 = vcmask 111616
        %190 = vst.msk [vmem:[%s136 + $0x8] sm:$0x3f] %vm189, %v186
        %p191 = scmp.lt.s32.totalorder %s15, 7
        %s192 = scalar_select %p191, %s15, 7
        %s193 = smul.addr %s192, 2
        %s194 = smul.addr %s193, 8
        %s195 = scalar_lea.vmem %s1, %s194
        // Predicated region
        $region29: #{tpu_custom_call.1} parent=23 // pred_check
          %p196 = pneg %p59
        $region30: #{tpu_custom_call.1} parent=23 // pred_check_branch
          %198 = sbr.rel (%p196) target = $region32
        $region31: #{tpu_custom_call.1} parent=23 // pred_region
          _
        $region32: #{tpu_custom_call.1} parent=23 // pred_fallthru
          _
      $region24: #{tpu_custom_call.1} parent=5 // pred_fallthru
        _
      %p199 = scmp.le.s32.totalorder 2, %s10
      // Predicated region
      $region33: #{tpu_custom_call.1} parent=5 // pred_check
        %p200 = pneg %p199
      $region34: #{tpu_custom_call.1} parent=5 // pred_check_branch
        %202 = sbr.rel (%p200) target = $region36
      $region35: #{tpu_custom_call.1} parent=5 // pred_region
        %s203 = ssub.s32 %s10, 2
        // Predicated region
        $region37: #{tpu_custom_call.1} parent=35 // pred_check
          %p204 = pneg %p65
        $region38: #{tpu_custom_call.1} parent=35 // pred_check_branch
          %206 = sbr.rel (%p204) target = $region40
        $region39: #{tpu_custom_call.1} parent=35 // pred_region
          %p207 = scmp.lt.s32.totalorder %s16, 7
          %s208 = scalar_select %p207, %s16, 7
          %s209 = smul.addr %s208, 2
          %s210 = smul.addr %s209, 8
          %s211 = scalar_lea.vmem %s1, %s210
        $region40: #{tpu_custom_call.1} parent=35 // pred_fallthru
          _
      $region36: #{tpu_custom_call.1} parent=5 // pred_fallthru
        _
    $region6: #{tpu_custom_call.1} parent=1 // loop_footer
      %s14 = sadd.s32 1, %s10
    $region7: #{tpu_custom_call.1} parent=1 // loop_footer_branch
      %9 = sbr.rel target = $region3
    $region8: #{tpu_custom_call.1} parent=1 // loop_exit
      _
    %212 = vsyncpa [#allocation3], 1
    %s213 = scalar_lea.sflag [#allocation3], 1
    %214 = vsyncpa %s213, 1

</llo_original>
